<compile_context>
chip_gen: v6e
topology: v6e:2x2x1
jax: 0.10.0
libtpu: 0.0.40
codegen_flags: <defaults>
</compile_context>

<pallas_src>
import jax
import jax.numpy as jnp
from jax import lax
from jax.experimental import pallas as pl
from jax.experimental.pallas import tpu as pltpu


def _round_up(x, m):
    return ((x + m - 1) // m) * m


def whitened_embedding_forward(video_id, weight, eps=1e-3,
                               row_tile=512, batch_tile=128):
    """Pallas implementation of WhitenedEmbedding.forward.

    video_id:   int32 [bs]
    weight:     float32 [num_embeddings, embedding_dim]
    row_tile:   rows per grid step of the fused stats sweep (sweepable;
                multiples of 256 fill the v6e/v7x MXU, 128 suffices on v5e)
    batch_tile: rows per grid step of the gather/whiten stage (sweepable)
    returns:    float32 [bs, embedding_dim]
    """
    V, D = weight.shape
    bs = video_id.shape[0]

    # ------------------ 1) fused colsum + Gram (W^T W) sweep --------------- #
    rt = _round_up(min(row_tile, _round_up(V, 8)), 8)
    n_tiles = pl.cdiv(V, rt)
    needs_mask = (V % rt) != 0
    # TODO(synk): on v7x the reduction axis could be split (2, n_tiles/2) with
    # a leading "parallel" axis producing two partial Grams summed outside.

    def _stats_kernel(w_ref, ssum_ref, gram_ref):
        @pl.when(pl.program_id(0) == 0)
        def _():
            ssum_ref[...] = jnp.zeros_like(ssum_ref)
            gram_ref[...] = jnp.zeros_like(gram_ref)

        w = w_ref[...].astype(jnp.float32)
        if needs_mask:
            # zero out rows past the end of the table in the (partial) tail tile
            row0 = pl.program_id(0) * rt
            local = lax.broadcasted_iota(jnp.int32, (rt, 1), 0)
            w = jnp.where(row0 + local < V, w, 0.0)

        # Column-sum partials kept as an (8, D) accumulator: adding (8, D)
        # sublane-aligned slices is pure VPU work (no per-tile cross-sublane
        # XLU reduce); the final 8 -> 1 reduce happens once in the wrapper.
        psum = w[0:8, :]
        for j in range(8, rt, 8):
            psum = psum + w[j:j + 8, :]
        ssum_ref[...] += psum

        # Gram matrix W^T W without an explicit transpose: contract dim 0 of
        # both operands so the MXU consumes the natural row-major layout.
        gram_ref[...] += lax.dot_general(
            w, w,
            dimension_numbers=(((0,), (0,)), ((), ())),
            preferred_element_type=jnp.float32)

    # VMEM budget: double-buffered weight tile + resident accumulators
    # (explicitly set so the tuned tile also fits v7x's smaller 64 MiB VMEM).
    stats_vmem = (2 * rt * D * 4 + 2 * D * D * 4 + 2 * 8 * D * 4 + (4 << 20))
    stats_vmem = int(min(max(stats_vmem, 16 << 20), 64 << 20))

    ssum, gram = pl.pallas_call(
        _stats_kernel,
        out_shape=(jax.ShapeDtypeStruct((8, D), jnp.float32),
                   jax.ShapeDtypeStruct((D, D), jnp.float32)),
        grid_spec=pltpu.PrefetchScalarGridSpec(
            num_scalar_prefetch=0,
            grid=(n_tiles,),
            in_specs=[pl.BlockSpec((rt, D), lambda i: (i, 0))],
            out_specs=(pl.BlockSpec((8, D), lambda i: (0, 0)),
                       pl.BlockSpec((D, D), lambda i: (0, 0)))),
        compiler_params=pltpu.CompilerParams(
            dimension_semantics=("arbitrary",),
            vmem_limit_bytes=stats_vmem),
    )(weight)

    # ------------- 2) mean / covariance finalization (tiny, plain JAX) ----- #
    m = jnp.sum(ssum, axis=0) / V                       # (D,)
    # (W - m)^T (W - m) == W^T W - V * m m^T  (single-pass fused form)
    f_cov = (gram - V * jnp.outer(m, m)) / (V - 1)

    # TODO(synk): Cholesky / triangular_solve are inherently sequential DxD
    # factorizations with no clean Pallas TPU equivalent; kept in plain JAX.
    eye = jnp.eye(D, dtype=jnp.float32)
    f_cov_shrunk = (1.0 - eps) * f_cov + eps * eye
    chol = jnp.linalg.cholesky(f_cov_shrunk)
    inv_sqrt = jax.scipy.linalg.solve_triangular(chol, eye, lower=True)
    inv_sqrt_t = inv_sqrt.T                             # out = xn @ inv_sqrt^T
    m2d = m.reshape(1, D)

    # ------------- 3) batched gather + center + whiten --------------------- #
    tb = _round_up(min(batch_tile, _round_up(bs, 8)), 8)
    padded_bs = _round_up(bs, tb)
    ids = video_id.astype(jnp.int32)
    if padded_bs != bs:
        # pad with id 0 (a valid row); padded output rows are sliced off below
        ids = jnp.concatenate(
            [ids, jnp.zeros((padded_bs - bs,), dtype=jnp.int32)])
    n_btiles = padded_bs // tb

    def _gather_whiten_kernel(ids_ref, w_hbm, m_ref, invT_ref, o_ref,
                              xbuf, sems):
        base = pl.program_id(0) * tb
        # Issue all row-gather DMAs for this batch tile (they overlap each
        # other), then wait and run one MXU-filling (tb, D) @ (D, D) matmul.
        copies = []
        for r in range(tb):
            idx = ids_ref[base + r]
            c = pltpu.make_async_copy(w_hbm.at[pl.ds(idx, 1), :],
                                      xbuf.at[pl.ds(r, 1), :],
                                      sems.at[r])
            c.start()
            copies.append(c)
        for c in copies:
            c.wait()
        xn = xbuf[...].astype(jnp.float32) - m_ref[...]
        o_ref[...] = jnp.dot(xn, invT_ref[...],
                             preferred_element_type=jnp.float32
                             ).astype(o_ref.dtype)

    gather_vmem = (tb * D * 4 + 2 * tb * D * 4 + 2 * D * D * 4
                   + 2 * D * 4 + (4 << 20))
    gather_vmem = int(min(max(gather_vmem, 16 << 20), 64 << 20))

    out_padded = pl.pallas_call(
        _gather_whiten_kernel,
        out_shape=jax.ShapeDtypeStruct((padded_bs, D), jnp.float32),
        grid_spec=pltpu.PrefetchScalarGridSpec(
            num_scalar_prefetch=1,                 # video_id lands in SMEM
            grid=(n_btiles,),
            in_specs=[
                pl.BlockSpec(memory_space=pl.ANY),          # table stays in HBM
                pl.BlockSpec((1, D), lambda b, ids: (0, 0)),  # mean
                pl.BlockSpec((D, D), lambda b, ids: (0, 0)),  # inv_sqrt^T
            ],
            out_specs=pl.BlockSpec((tb, D), lambda b, ids: (b, 0)),
            scratch_shapes=[pltpu.VMEM((tb, D), weight.dtype),
                            pltpu.SemaphoreType.DMA((tb,))]),
        compiler_params=pltpu.CompilerParams(
            dimension_semantics=("parallel",),     # shard batch tiles over TCs
            vmem_limit_bytes=gather_vmem),
    )(ids, weight, m2d, inv_sqrt_t)

    return out_padded[:bs]


# ----------------------------- reference ----------------------------------- #

def whitened_embedding_ref(video_id, weight, eps=1e-3):
    x = weight[video_id]
    m = weight.mean(0)
    xn = x - m
    xn_all = weight - m
    f_cov = xn_all.T @ xn_all / (weight.shape[0] - 1)
    eye = jnp.eye(weight.shape[1], dtype=weight.dtype)
    f_cov_shrunk = (1 - eps) * f_cov + eps * eye
    chol = jnp.linalg.cholesky(f_cov_shrunk)
    inv_sqrt = jax.scipy.linalg.solve_triangular(chol, eye, lower=True)
    return xn @ inv_sqrt.T


# ------------------------------- main --------------------------------------- #

if __name__ == "__main__":
    eps = 0.001
    key = jax.random.PRNGKey(0)
    k_w1, k_id1, k_w2, k_id2 = jax.random.split(key, 4)

    # Case 1: aligned shapes, default (large) tiles.
    V1, D1, bs1 = 512, 128, 16
    weight1 = jax.random.normal(k_w1, (V1, D1), dtype=jnp.float32)
    video_id1 = jax.random.randint(k_id1, (bs1,), 0, V1, dtype=jnp.int32)
    out1 = jax.block_until_ready(
        whitened_embedding_forward(video_id1, weight1, eps=eps))
    ref1 = whitened_embedding_ref(video_id1, weight1, eps=eps)
    assert out1.shape == (bs1, D1)
    assert jnp.allclose(out1, ref1, rtol=1e-4, atol=1e-4), "case 1 mismatch"

    # Case 2: ragged shapes — exercises tail-tile masking (V % row_tile != 0)
    # and batch padding (bs % batch_tile != 0).
    V2, D2, bs2 = 336, 128, 10
    weight2 = jax.random.normal(k_w2, (V2, D2), dtype=jnp.float32)
    video_id2 = jax.random.randint(k_id2, (bs2,), 0, V2, dtype=jnp.int32)
    out2 = jax.block_until_ready(
        whitened_embedding_forward(video_id2, weight2, eps=eps,
                                   row_tile=128, batch_tile=8))
    ref2 = whitened_embedding_ref(video_id2, weight2, eps=eps)
    assert out2.shape == (bs2, D2)
    assert jnp.allclose(out2, ref2, rtol=1e-4, atol=1e-4), "case 2 mismatch"

    print("KERNEL_OK")
</pallas_src>

<mosaic_0001>
module attributes {stable_mosaic.version = 11 : i64} {
  func.func @_stats_kernel(%arg0: i32, %arg1: memref<512x128xf32, #tpu.memory_space<vmem>>, %arg2: memref<8x128xf32, #tpu.memory_space<vmem>>, %arg3: memref<128x128xf32, #tpu.memory_space<vmem>>) attributes {dimension_semantics = [#tpu.dimension_semantics<arbitrary>], iteration_bounds = array<i64: 1>, scalar_prefetch = 0 : i64, scratch_operands = 0 : i64, tpu.core_type = #tpu.core_type<tc>, window_params = [{transform_indices = @transform_0, window_bounds = array<i64: 512, 128>}, {pipeline_mode = #tpu.pipeline_mode<synchronous>, transform_indices = @transform_1, window_bounds = array<i64: 8, 128>}, {pipeline_mode = #tpu.pipeline_mode<synchronous>, transform_indices = @transform_2, window_bounds = array<i64: 128, 128>}]} {
    %c0_i32 = arith.constant 0 : i32
    %0 = arith.cmpi eq, %arg0, %c0_i32 : i32
    %1 = arith.extui %0 : i1 to i32
    %c0_i32_0 = arith.constant 0 : i32
    %2 = arith.cmpi ne, %1, %c0_i32_0 : i32
    scf.if %2 {
      %cst_10 = arith.constant 0.000000e+00 : f32
      %138 = vector.broadcast %cst_10 : f32 to vector<8x128xf32>
      %c0_11 = arith.constant 0 : index
      %c0_12 = arith.constant 0 : index
      %139 = vector.load %arg2[%c0_11, %c0_12] : memref<8x128xf32, #tpu.memory_space<vmem>>, vector<8x128xf32>
      tpu.vector_store %arg2[%c0_11, %c0_12], %138 {strides = array<i32>} : memref<8x128xf32, #tpu.memory_space<vmem>>, vector<8x128xf32>,
      %cst_13 = arith.constant 0.000000e+00 : f32
      %140 = vector.broadcast %cst_13 : f32 to vector<128x128xf32>
      %c0_14 = arith.constant 0 : index
      %c0_15 = arith.constant 0 : index
      %141 = vector.load %arg3[%c0_14, %c0_15] : memref<128x128xf32, #tpu.memory_space<vmem>>, vector<128x128xf32>
      tpu.vector_store %arg3[%c0_14, %c0_15], %140 {strides = array<i32>} : memref<128x128xf32, #tpu.memory_space<vmem>>, vector<128x128xf32>,
    } else {
    }
    %c0 = arith.constant 0 : index
    %c0_1 = arith.constant 0 : index
    %3 = vector.load %arg1[%c0, %c0_1] : memref<512x128xf32, #tpu.memory_space<vmem>>, vector<512x128xf32>
    %4 = vector.extract_strided_slice %3 {offsets = [0, 0], sizes = [8, 128], strides = [1, 1]} : vector<512x128xf32> to vector<8x128xf32>
    %5 = vector.extract_strided_slice %3 {offsets = [8, 0], sizes = [8, 128], strides = [1, 1]} : vector<512x128xf32> to vector<8x128xf32>
    %6 = arith.addf %4, %5 : vector<8x128xf32>
    %7 = vector.extract_strided_slice %3 {offsets = [16, 0], sizes = [8, 128], strides = [1, 1]} : vector<512x128xf32> to vector<8x128xf32>
    %8 = arith.addf %6, %7 : vector<8x128xf32>
    %9 = vector.extract_strided_slice %3 {offsets = [24, 0], sizes = [8, 128], strides = [1, 1]} : vector<512x128xf32> to vector<8x128xf32>
    %10 = arith.addf %8, %9 : vector<8x128xf32>
    %11 = vector.extract_strided_slice %3 {offsets = [32, 0], sizes = [8, 128], strides = [1, 1]} : vector<512x128xf32> to vector<8x128xf32>
    %12 = arith.addf %10, %11 : vector<8x128xf32>
    %13 = vector.extract_strided_slice %3 {offsets = [40, 0], sizes = [8, 128], strides = [1, 1]} : vector<512x128xf32> to vector<8x128xf32>
    %14 = arith.addf %12, %13 : vector<8x128xf32>
    %15 = vector.extract_strided_slice %3 {offsets = [48, 0], sizes = [8, 128], strides = [1, 1]} : vector<512x128xf32> to vector<8x128xf32>
    %16 = arith.addf %14, %15 : vector<8x128xf32>
    %17 = vector.extract_strided_slice %3 {offsets = [56, 0], sizes = [8, 128], strides = [1, 1]} : vector<512x128xf32> to vector<8x128xf32>
    %18 = arith.addf %16, %17 : vector<8x128xf32>
    %19 = vector.extract_strided_slice %3 {offsets = [64, 0], sizes = [8, 128], strides = [1, 1]} : vector<512x128xf32> to vector<8x128xf32>
    %20 = arith.addf %18, %19 : vector<8x128xf32>
    %21 = vector.extract_strided_slice %3 {offsets = [72, 0], sizes = [8, 128], strides = [1, 1]} : vector<512x128xf32> to vector<8x128xf32>
    %22 = arith.addf %20, %21 : vector<8x128xf32>
    %23 = vector.extract_strided_slice %3 {offsets = [80, 0], sizes = [8, 128], strides = [1, 1]} : vector<512x128xf32> to vector<8x128xf32>
    %24 = arith.addf %22, %23 : vector<8x128xf32>
    %25 = vector.extract_strided_slice %3 {offsets = [88, 0], sizes = [8, 128], strides = [1, 1]} : vector<512x128xf32> to vector<8x128xf32>
    %26 = arith.addf %24, %25 : vector<8x128xf32>
    %27 = vector.extract_strided_slice %3 {offsets = [96, 0], sizes = [8, 128], strides = [1, 1]} : vector<512x128xf32> to vector<8x128xf32>
    %28 = arith.addf %26, %27 : vector<8x128xf32>
    %29 = vector.extract_strided_slice %3 {offsets = [104, 0], sizes = [8, 128], strides = [1, 1]} : vector<512x128xf32> to vector<8x128xf32>
    %30 = arith.addf %28, %29 : vector<8x128xf32>
    %31 = vector.extract_strided_slice %3 {offsets = [112, 0], sizes = [8, 128], strides = [1, 1]} : vector<512x128xf32> to vector<8x128xf32>
    %32 = arith.addf %30, %31 : vector<8x128xf32>
    %33 = vector.extract_strided_slice %3 {offsets = [120, 0], sizes = [8, 128], strides = [1, 1]} : vector<512x128xf32> to vector<8x128xf32>
    %34 = arith.addf %32, %33 : vector<8x128xf32>
    %35 = vector.extract_strided_slice %3 {offsets = [128, 0], sizes = [8, 128], strides = [1, 1]} : vector<512x128xf32> to vector<8x128xf32>
    %36 = arith.addf %34, %35 : vector<8x128xf32>
    %37 = vector.extract_strided_slice %3 {offsets = [136, 0], sizes = [8, 128], strides = [1, 1]} : vector<512x128xf32> to vector<8x128xf32>
    %38 = arith.addf %36, %37 : vector<8x128xf32>
    %39 = vector.extract_strided_slice %3 {offsets = [144, 0], sizes = [8, 128], strides = [1, 1]} : vector<512x128xf32> to vector<8x128xf32>
    %40 = arith.addf %38, %39 : vector<8x128xf32>
    %41 = vector.extract_strided_slice %3 {offsets = [152, 0], sizes = [8, 128], strides = [1, 1]} : vector<512x128xf32> to vector<8x128xf32>
    %42 = arith.addf %40, %41 : vector<8x128xf32>
    %43 = vector.extract_strided_slice %3 {offsets = [160, 0], sizes = [8, 128], strides = [1, 1]} : vector<512x128xf32> to vector<8x128xf32>
    %44 = arith.addf %42, %43 : vector<8x128xf32>
    %45 = vector.extract_strided_slice %3 {offsets = [168, 0], sizes = [8, 128], strides = [1, 1]} : vector<512x128xf32> to vector<8x128xf32>
    %46 = arith.addf %44, %45 : vector<8x128xf32>
    %47 = vector.extract_strided_slice %3 {offsets = [176, 0], sizes = [8, 128], strides = [1, 1]} : vector<512x128xf32> to vector<8x128xf32>
    %48 = arith.addf %46, %47 : vector<8x128xf32>
    %49 = vector.extract_strided_slice %3 {offsets = [184, 0], sizes = [8, 128], strides = [1, 1]} : vector<512x128xf32> to vector<8x128xf32>
    %50 = arith.addf %48, %49 : vector<8x128xf32>
    %51 = vector.extract_strided_slice %3 {offsets = [192, 0], sizes = [8, 128], strides = [1, 1]} : vector<512x128xf32> to vector<8x128xf32>
    %52 = arith.addf %50, %51 : vector<8x128xf32>
    %53 = vector.extract_strided_slice %3 {offsets = [200, 0], sizes = [8, 128], strides = [1, 1]} : vector<512x128xf32> to vector<8x128xf32>
    %54 = arith.addf %52, %53 : vector<8x128xf32>
    %55 = vector.extract_strided_slice %3 {offsets = [208, 0], sizes = [8, 128], strides = [1, 1]} : vector<512x128xf32> to vector<8x128xf32>
    %56 = arith.addf %54, %55 : vector<8x128xf32>
    %57 = vector.extract_strided_slice %3 {offsets = [216, 0], sizes = [8, 128], strides = [1, 1]} : vector<512x128xf32> to vector<8x128xf32>
    %58 = arith.addf %56, %57 : vector<8x128xf32>
    %59 = vector.extract_strided_slice %3 {offsets = [224, 0], sizes = [8, 128], strides = [1, 1]} : vector<512x128xf32> to vector<8x128xf32>
    %60 = arith.addf %58, %59 : vector<8x128xf32>
    %61 = vector.extract_strided_slice %3 {offsets = [232, 0], sizes = [8, 128], strides = [1, 1]} : vector<512x128xf32> to vector<8x128xf32>
    %62 = arith.addf %60, %61 : vector<8x128xf32>
    %63 = vector.extract_strided_slice %3 {offsets = [240, 0], sizes = [8, 128], strides = [1, 1]} : vector<512x128xf32> to vector<8x128xf32>
    %64 = arith.addf %62, %63 : vector<8x128xf32>
    %65 = vector.extract_strided_slice %3 {offsets = [248, 0], sizes = [8, 128], strides = [1, 1]} : vector<512x128xf32> to vector<8x128xf32>
    %66 = arith.addf %64, %65 : vector<8x128xf32>
    %67 = vector.extract_strided_slice %3 {offsets = [256, 0], sizes = [8, 128], strides = [1, 1]} : vector<512x128xf32> to vector<8x128xf32>
    %68 = arith.addf %66, %67 : vector<8x128xf32>
    %69 = vector.extract_strided_slice %3 {offsets = [264, 0], sizes = [8, 128], strides = [1, 1]} : vector<512x128xf32> to vector<8x128xf32>
    %70 = arith.addf %68, %69 : vector<8x128xf32>
    %71 = vector.extract_strided_slice %3 {offsets = [272, 0], sizes = [8, 128], strides = [1, 1]} : vector<512x128xf32> to vector<8x128xf32>
    %72 = arith.addf %70, %71 : vector<8x128xf32>
    %73 = vector.extract_strided_slice %3 {offsets = [280, 0], sizes = [8, 128], strides = [1, 1]} : vector<512x128xf32> to vector<8x128xf32>
    %74 = arith.addf %72, %73 : vector<8x128xf32>
    %75 = vector.extract_strided_slice %3 {offsets = [288, 0], sizes = [8, 128], strides = [1, 1]} : vector<512x128xf32> to vector<8x128xf32>
    %76 = arith.addf %74, %75 : vector<8x128xf32>
    %77 = vector.extract_strided_slice %3 {offsets = [296, 0], sizes = [8, 128], strides = [1, 1]} : vector<512x128xf32> to vector<8x128xf32>
    %78 = arith.addf %76, %77 : vector<8x128xf32>
    %79 = vector.extract_strided_slice %3 {offsets = [304, 0], sizes = [8, 128], strides = [1, 1]} : vector<512x128xf32> to vector<8x128xf32>
    %80 = arith.addf %78, %79 : vector<8x128xf32>
    %81 = vector.extract_strided_slice %3 {offsets = [312, 0], sizes = [8, 128], strides = [1, 1]} : vector<512x128xf32> to vector<8x128xf32>
    %82 = arith.addf %80, %81 : vector<8x128xf32>
    %83 = vector.extract_strided_slice %3 {offsets = [320, 0], sizes = [8, 128], strides = [1, 1]} : vector<512x128xf32> to vector<8x128xf32>
    %84 = arith.addf %82, %83 : vector<8x128xf32>
    %85 = vector.extract_strided_slice %3 {offsets = [328, 0], sizes = [8, 128], strides = [1, 1]} : vector<512x128xf32> to vector<8x128xf32>
    %86 = arith.addf %84, %85 : vector<8x128xf32>
    %87 = vector.extract_strided_slice %3 {offsets = [336, 0], sizes = [8, 128], strides = [1, 1]} : vector<512x128xf32> to vector<8x128xf32>
    %88 = arith.addf %86, %87 : vector<8x128xf32>
    %89 = vector.extract_strided_slice %3 {offsets = [344, 0], sizes = [8, 128], strides = [1, 1]} : vector<512x128xf32> to vector<8x128xf32>
    %90 = arith.addf %88, %89 : vector<8x128xf32>
    %91 = vector.extract_strided_slice %3 {offsets = [352, 0], sizes = [8, 128], strides = [1, 1]} : vector<512x128xf32> to vector<8x128xf32>
    %92 = arith.addf %90, %91 : vector<8x128xf32>
    %93 = vector.extract_strided_slice %3 {offsets = [360, 0], sizes = [8, 128], strides = [1, 1]} : vector<512x128xf32> to vector<8x128xf32>
    %94 = arith.addf %92, %93 : vector<8x128xf32>
    %95 = vector.extract_strided_slice %3 {offsets = [368, 0], sizes = [8, 128], strides = [1, 1]} : vector<512x128xf32> to vector<8x128xf32>
    %96 = arith.addf %94, %95 : vector<8x128xf32>
    %97 = vector.extract_strided_slice %3 {offsets = [376, 0], sizes = [8, 128], strides = [1, 1]} : vector<512x128xf32> to vector<8x128xf32>
    %98 = arith.addf %96, %97 : vector<8x128xf32>
    %99 = vector.extract_strided_slice %3 {offsets = [384, 0], sizes = [8, 128], strides = [1, 1]} : vector<512x128xf32> to vector<8x128xf32>
    %100 = arith.addf %98, %99 : vector<8x128xf32>
    %101 = vector.extract_strided_slice %3 {offsets = [392, 0], sizes = [8, 128], strides = [1, 1]} : vector<512x128xf32> to vector<8x128xf32>
    %102 = arith.addf %100, %101 : vector<8x128xf32>
    %103 = vector.extract_strided_slice %3 {offsets = [400, 0], sizes = [8, 128], strides = [1, 1]} : vector<512x128xf32> to vector<8x128xf32>
    %104 = arith.addf %102, %103 : vector<8x128xf32>
    %105 = vector.extract_strided_slice %3 {offsets = [408, 0], sizes = [8, 128], strides = [1, 1]} : vector<512x128xf32> to vector<8x128xf32>
    %106 = arith.addf %104, %105 : vector<8x128xf32>
    %107 = vector.extract_strided_slice %3 {offsets = [416, 0], sizes = [8, 128], strides = [1, 1]} : vector<512x128xf32> to vector<8x128xf32>
    %108 = arith.addf %106, %107 : vector<8x128xf32>
    %109 = vector.extract_strided_slice %3 {offsets = [424, 0], sizes = [8, 128], strides = [1, 1]} : vector<512x128xf32> to vector<8x128xf32>
    %110 = arith.addf %108, %109 : vector<8x128xf32>
    %111 = vector.extract_strided_slice %3 {offsets = [432, 0], sizes = [8, 128], strides = [1, 1]} : vector<512x128xf32> to vector<8x128xf32>
    %112 = arith.addf %110, %111 : vector<8x128xf32>
    %113 = vector.extract_strided_slice %3 {offsets = [440, 0], sizes = [8, 128], strides = [1, 1]} : vector<512x128xf32> to vector<8x128xf32>
    %114 = arith.addf %112, %113 : vector<8x128xf32>
    %115 = vector.extract_strided_slice %3 {offsets = [448, 0], sizes = [8, 128], strides = [1, 1]} : vector<512x128xf32> to vector<8x128xf32>
    %116 = arith.addf %114, %115 : vector<8x128xf32>
    %117 = vector.extract_strided_slice %3 {offsets = [456, 0], sizes = [8, 128], strides = [1, 1]} : vector<512x128xf32> to vector<8x128xf32>
    %118 = arith.addf %116, %117 : vector<8x128xf32>
    %119 = vector.extract_strided_slice %3 {offsets = [464, 0], sizes = [8, 128], strides = [1, 1]} : vector<512x128xf32> to vector<8x128xf32>
    %120 = arith.addf %118, %119 : vector<8x128xf32>
    %121 = vector.extract_strided_slice %3 {offsets = [472, 0], sizes = [8, 128], strides = [1, 1]} : vector<512x128xf32> to vector<8x128xf32>
    %122 = arith.addf %120, %121 : vector<8x128xf32>
    %123 = vector.extract_strided_slice %3 {offsets = [480, 0], sizes = [8, 128], strides = [1, 1]} : vector<512x128xf32> to vector<8x128xf32>
    %124 = arith.addf %122, %123 : vector<8x128xf32>
    %125 = vector.extract_strided_slice %3 {offsets = [488, 0], sizes = [8, 128], strides = [1, 1]} : vector<512x128xf32> to vector<8x128xf32>
    %126 = arith.addf %124, %125 : vector<8x128xf32>
    %127 = vector.extract_strided_slice %3 {offsets = [496, 0], sizes = [8, 128], strides = [1, 1]} : vector<512x128xf32> to vector<8x128xf32>
    %128 = arith.addf %126, %127 : vector<8x128xf32>
    %129 = vector.extract_strided_slice %3 {offsets = [504, 0], sizes = [8, 128], strides = [1, 1]} : vector<512x128xf32> to vector<8x128xf32>
    %130 = arith.addf %128, %129 : vector<8x128xf32>
    %c0_2 = arith.constant 0 : index
    %c0_3 = arith.constant 0 : index
    %131 = vector.load %arg2[%c0_2, %c0_3] : memref<8x128xf32, #tpu.memory_space<vmem>>, vector<8x128xf32>
    %132 = arith.addf %131, %130 : vector<8x128xf32>
    %c0_4 = arith.constant 0 : index
    %c0_5 = arith.constant 0 : index
    %133 = vector.load %arg2[%c0_4, %c0_5] : memref<8x128xf32, #tpu.memory_space<vmem>>, vector<8x128xf32>
    tpu.vector_store %arg2[%c0_4, %c0_5], %132 {strides = array<i32>} : memref<8x128xf32, #tpu.memory_space<vmem>>, vector<8x128xf32>,
    %c0_6 = arith.constant 0 : index
    %c0_7 = arith.constant 0 : index
    %134 = vector.load %arg3[%c0_6, %c0_7] : memref<128x128xf32, #tpu.memory_space<vmem>>, vector<128x128xf32>
    %cst = arith.constant dense<0.000000e+00> : vector<128x128xf32>
    %135 = tpu.matmul %3, %3, %cst {dimension_numbers = #tpu.dot_dimension_numbers<[0], [0], [1], [1], [0, 1, 1, 1], [], []>} : vector<512x128xf32>, vector<512x128xf32>, vector<128x128xf32> -> vector<128x128xf32>
    %136 = arith.addf %134, %135 : vector<128x128xf32>
    %c0_8 = arith.constant 0 : index
    %c0_9 = arith.constant 0 : index
    %137 = vector.load %arg3[%c0_8, %c0_9] : memref<128x128xf32, #tpu.memory_space<vmem>>, vector<128x128xf32>
    tpu.vector_store %arg3[%c0_8, %c0_9], %136 {strides = array<i32>} : memref<128x128xf32, #tpu.memory_space<vmem>>, vector<128x128xf32>,
    return
  }
  func.func @transform_0(%arg0: i32) -> (i32, i32) {
    %c0_i32 = arith.constant 0 : i32
    %c0_i32_0 = arith.constant 0 : i32
    return %arg0, %c0_i32 : i32, i32
  }
  func.func @transform_1(%arg0: i32) -> (i32, i32) {
    %c0_i32 = arith.constant 0 : i32
    %c0_i32_0 = arith.constant 0 : i32
    %c0_i32_1 = arith.constant 0 : i32
    return %c0_i32, %c0_i32_0 : i32, i32
  }
  func.func @transform_2(%arg0: i32) -> (i32, i32) {
    %c0_i32 = arith.constant 0 : i32
    %c0_i32_0 = arith.constant 0 : i32
    %c0_i32_1 = arith.constant 0 : i32
    return %c0_i32, %c0_i32_0 : i32, i32
  }
}

</mosaic_0001>

<llo_original>
// kernel: tpu_custom_call.1
$region0: #{tpu_custom_call.1}
  #allocation0 [shape = 'u32[]', space=smem, size = 0x4, offset = 0x4, fixed_abs, tag = 'smem constant byte address 0x4 - core index']
  #allocation1 [shape = 'u32[144,128]{1,0:T(1,128)}', space=vmem, size = 0x12000, scoped, tag = 'internal scratch']
  %s0 = inlined_call_operand.hbm [shape: f32[512,128], index: 0, kind: input, shape index: {}]
  %s1 = inlined_call_operand.hbm [shape: f32[8,128], index: 1, kind: output, shape index: {0}]
  %s2 = inlined_call_operand.hbm [shape: f32[128,128], index: 2, kind: output, shape index: {1}]
  %3 = xla_tuple %s1, %s2
  %s4 = sld [smem:[#allocation0]]
  $region30: #{tpu_custom_call.1} parent=0
    _
  %s6 = ssub.s32 1, %s4
  %s7 = scalar_select 0, %s6, %s4
  $region1: #{tpu_custom_call.1} parent=0
    #allocation2 [shape = 'u8[262144]{0}', space=vmem, size = 0x40000, scoped, tag = 'input window, operand 0, single buffered']
    #allocation3 [shape = 's32[1]{0}', space=sflag, size = 0x4, scoped, tag = 'scoped memory for tpu_custom_call.1']
    #allocation4 [shape = 's32[1]{0}', space=sflag, size = 0x4, scoped, tag = 'scoped memory for tpu_custom_call.1']
    #allocation5 [shape = 'u8[4096]{0}', space=vmem, size = 0x1000, scoped, tag = 'output window, operand 0, single buffered']
    #allocation6 [shape = 'u8[65536]{0}', space=vmem, size = 0x10000, scoped, tag = 'output window, operand 1, single buffered']
    #allocation7 [shape = 's32[1]{0}', space=sflag, size = 0x4, scoped, tag = 'scoped memory for tpu_custom_call.1']
    %8 = vsyncpa [#allocation3], 0
    %9 = vsyncpa [#allocation4], 0
    %10 = vsyncpa [#allocation7], 0
    // Predicated region
    $region2: #{tpu_custom_call.1} parent=1 // pred_check
      _
    $region3: #{tpu_custom_call.1} parent=1 // pred_check_branch
      %12 = sbr.rel (0) target = $region5
    $region4: #{tpu_custom_call.1} parent=1 // pred_region
      %s14 = ssub.s32 8192, 8192
      %15 = vsyncadd [#allocation3], %s14
      %s16 = sshll.u32 [#allocation2], 4
      %s17 = int_to_ptr.vmem [resolvable:$true] %s16
      %22 = dma.hbm_to_vmem [thread:$0]  %s0, 8192, %s17, [#allocation3], 128, 128, 8
    $region5: #{tpu_custom_call.1} parent=1 // pred_fallthru
      _
    // Predicated region
    $region6: #{tpu_custom_call.1} parent=1 // pred_check
      _
    $region7: #{tpu_custom_call.1} parent=1 // pred_check_branch
      %24 = sbr.rel (0) target = $region9
    $region8: #{tpu_custom_call.1} parent=1 // pred_region
      %25 = dma.done [#allocation3], 8192
    $region9: #{tpu_custom_call.1} parent=1 // pred_fallthru
      _
    %p26 = scmp.eq.s32.totalorder 0, 0
    // Predicated region
    $region10: #{tpu_custom_call.1} parent=1 // pred_check
      %p27 = pneg %p26
    $region11: #{tpu_custom_call.1} parent=1 // pred_check_branch
      %29 = sbr.rel (%p27) target = $region13
    $region12: #{tpu_custom_call.1} parent=1 // pred_region
      %30 = vst [vmem:[#allocation5] sm:$0xff] 0.0
      %31 = vst [vmem:[#allocation6] sm:$0xff] 0.0
      %32 = vst [vmem:[#allocation6 + $0x8] sm:$0xff] 0.0
      %33 = vst [vmem:[#allocation6 + $0x10] sm:$0xff] 0.0
      %34 = vst [vmem:[#allocation6 + $0x18] sm:$0xff] 0.0
      %35 = vst [vmem:[#allocation6 + $0x20] sm:$0xff] 0.0
      %36 = vst [vmem:[#allocation6 + $0x28] sm:$0xff] 0.0
      %37 = vst [vmem:[#allocation6 + $0x30] sm:$0xff] 0.0
      %38 = vst [vmem:[#allocation6 + $0x38] sm:$0xff] 0.0
      %39 = vst [vmem:[#allocation6 + $0x40] sm:$0xff] 0.0
      %40 = vst [vmem:[#allocation6 + $0x48] sm:$0xff] 0.0
      %41 = vst [vmem:[#allocation6 + $0x50] sm:$0xff] 0.0
      %42 = vst [vmem:[#allocation6 + $0x58] sm:$0xff] 0.0
      %43 = vst [vmem:[#allocation6 + $0x60] sm:$0xff] 0.0
      %44 = vst [vmem:[#allocation6 + $0x68] sm:$0xff] 0.0
      %45 = vst [vmem:[#allocation6 + $0x70] sm:$0xff] 0.0
      %46 = vst [vmem:[#allocation6 + $0x78] sm:$0xff] 0.0
    $region13: #{tpu_custom_call.1} parent=1 // pred_fallthru
      _
    %v47 = vld [vmem:[#allocation2] sm:$0xff]
    %v48 = vld [vmem:[#allocation2 + $0x8] sm:$0xff]
    %v49 = vld [vmem:[#allocation2 + $0x10] sm:$0xff]
    %v50 = vld [vmem:[#allocation2 + $0x18] sm:$0xff]
    %v51 = vld [vmem:[#allocation2 + $0x20] sm:$0xff]
    %v52 = vld [vmem:[#allocation2 + $0x28] sm:$0xff]
    %v53 = vld [vmem:[#allocation2 + $0x30] sm:$0xff]
    %v54 = vld [vmem:[#allocation2 + $0x38] sm:$0xff]
    %v55 = vld [vmem:[#allocation2 + $0x40] sm:$0xff]
    %v56 = vld [vmem:[#allocation2 + $0x48] sm:$0xff]
    %v57 = vld [vmem:[#allocation2 + $0x50] sm:$0xff]
    %v58 = vld [vmem:[#allocation2 + $0x58] sm:$0xff]
    %v59 = vld [vmem:[#allocation2 + $0x60] sm:$0xff]
    %v60 = vld [vmem:[#allocation2 + $0x68] sm:$0xff]
    %v61 = vld [vmem:[#allocation2 + $0x70] sm:$0xff]
    %v62 = vld [vmem:[#allocation2 + $0x78] sm:$0xff]
    %v63 = vld [vmem:[#allocation2 + $0x80] sm:$0xff]
    %v64 = vld [vmem:[#allocation2 + $0x88] sm:$0xff]
    %v65 = vld [vmem:[#allocation2 + $0x90] sm:$0xff]
    %v66 = vld [vmem:[#allocation2 + $0x98] sm:$0xff]
    %v67 = vld [vmem:[#allocation2 + $0xa0] sm:$0xff]
    %v68 = vld [vmem:[#allocation2 + $0xa8] sm:$0xff]
    %v69 = vld [vmem:[#allocation2 + $0xb0] sm:$0xff]
    %v70 = vld [vmem:[#allocation2 + $0xb8] sm:$0xff]
    %v71 = vld [vmem:[#allocation2 + $0xc0] sm:$0xff]
    %v72 = vld [vmem:[#allocation2 + $0xc8] sm:$0xff]
    %v73 = vld [vmem:[#allocation2 + $0xd0] sm:$0xff]
    %v74 = vld [vmem:[#allocation2 + $0xd8] sm:$0xff]
    %v75 = vld [vmem:[#allocation2 + $0xe0] sm:$0xff]
    %v76 = vld [vmem:[#allocation2 + $0xe8] sm:$0xff]
    %v77 = vld [vmem:[#allocation2 + $0xf0] sm:$0xff]
    %v78 = vld [vmem:[#allocation2 + $0xf8] sm:$0xff]
    %v79 = vld [vmem:[#allocation2 + $0x100] sm:$0xff]
    %v80 = vld [vmem:[#allocation2 + $0x108] sm:$0xff]
    %v81 = vld [vmem:[#allocation2 + $0x110] sm:$0xff]
    %v82 = vld [vmem:[#allocation2 + $0x118] sm:$0xff]
    %v83 = vld [vmem:[#allocation2 + $0x120] sm:$0xff]
    %v84 = vld [vmem:[#allocation2 + $0x128] sm:$0xff]
    %v85 = vld [vmem:[#allocation2 + $0x130] sm:$0xff]
    %v86 = vld [vmem:[#allocation2 + $0x138] sm:$0xff]
    %v87 = vld [vmem:[#allocation2 + $0x140] sm:$0xff]
    %v88 = vld [vmem:[#allocation2 + $0x148] sm:$0xff]
    %v89 = vld [vmem:[#allocation2 + $0x150] sm:$0xff]
    %v90 = vld [vmem:[#allocation2 + $0x158] sm:$0xff]
    %v91 = vld [vmem:[#allocation2 + $0x160] sm:$0xff]
    %v92 = vld [vmem:[#allocation2 + $0x168] sm:$0xff]
    %v93 = vld [vmem:[#allocation2 + $0x170] sm:$0xff]
    %v94 = vld [vmem:[#allocation2 + $0x178] sm:$0xff]
    %v95 = vld [vmem:[#allocation2 + $0x180] sm:$0xff]
    %v96 = vld [vmem:[#allocation2 + $0x188] sm:$0xff]
    %v97 = vld [vmem:[#allocation2 + $0x190] sm:$0xff]
    %v98 = vld [vmem:[#allocation2 + $0x198] sm:$0xff]
    %v99 = vld [vmem:[#allocation2 + $0x1a0] sm:$0xff]
    %v100 = vld [vmem:[#allocation2 + $0x1a8] sm:$0xff]
    %v101 = vld [vmem:[#allocation2 + $0x1b0] sm:$0xff]
    %v102 = vld [vmem:[#allocation2 + $0x1b8] sm:$0xff]
    %v103 = vld [vmem:[#allocation2 + $0x1c0] sm:$0xff]
    %v104 = vld [vmem:[#allocation2 + $0x1c8] sm:$0xff]
    %v105 = vld [vmem:[#allocation2 + $0x1d0] sm:$0xff]
    %v106 = vld [vmem:[#allocation2 + $0x1d8] sm:$0xff]
    %v107 = vld [vmem:[#allocation2 + $0x1e0] sm:$0xff]
    %v108 = vld [vmem:[#allocation2 + $0x1e8] sm:$0xff]
    %v109 = vld [vmem:[#allocation2 + $0x1f0] sm:$0xff]
    %v110 = vld [vmem:[#allocation2 + $0x1f8] sm:$0xff]
    %v111 = vadd.f32 %v47, %v48
    %v112 = vadd.f32 %v111, %v49
    %v113 = vadd.f32 %v112, %v50
    %v114 = vadd.f32 %v113, %v51
    %v115 = vadd.f32 %v114, %v52
    %v116 = vadd.f32 %v115, %v53
    %v117 = vadd.f32 %v116, %v54
    %v118 = vadd.f32 %v117, %v55
    %v119 = vadd.f32 %v118, %v56
    %v120 = vadd.f32 %v119, %v57
    %v121 = vadd.f32 %v120, %v58
    %v122 = vadd.f32 %v121, %v59
    %v123 = vadd.f32 %v122, %v60
    %v124 = vadd.f32 %v123, %v61
    %v125 = vadd.f32 %v124, %v62
    %v126 = vadd.f32 %v125, %v63
    %v127 = vadd.f32 %v126, %v64
    %v128 = vadd.f32 %v127, %v65
    %v129 = vadd.f32 %v128, %v66
    %v130 = vadd.f32 %v129, %v67
    %v131 = vadd.f32 %v130, %v68
    %v132 = vadd.f32 %v131, %v69
    %v133 = vadd.f32 %v132, %v70
    %v134 = vadd.f32 %v133, %v71
    %v135 = vadd.f32 %v134, %v72
    %v136 = vadd.f32 %v135, %v73
    %v137 = vadd.f32 %v136, %v74
    %v138 = vadd.f32 %v137, %v75
    %v139 = vadd.f32 %v138, %v76
    %v140 = vadd.f32 %v139, %v77
    %v141 = vadd.f32 %v140, %v78
    %v142 = vadd.f32 %v141, %v79
    %v143 = vadd.f32 %v142, %v80
    %v144 = vadd.f32 %v143, %v81
    %v145 = vadd.f32 %v144, %v82
    %v146 = vadd.f32 %v145, %v83
    %v147 = vadd.f32 %v146, %v84
    %v148 = vadd.f32 %v147, %v85
    %v149 = vadd.f32 %v148, %v86
    %v150 = vadd.f32 %v149, %v87
    %v151 = vadd.f32 %v150, %v88
    %v152 = vadd.f32 %v151, %v89
    %v153 = vadd.f32 %v152, %v90
    %v154 = vadd.f32 %v153, %v91
    %v155 = vadd.f32 %v154, %v92
    %v156 = vadd.f32 %v155, %v93
    %v157 = vadd.f32 %v156, %v94
    %v158 = vadd.f32 %v157, %v95
    %v159 = vadd.f32 %v158, %v96
    %v160 = vadd.f32 %v159, %v97
    %v161 = vadd.f32 %v160, %v98
    %v162 = vadd.f32 %v161, %v99
    %v163 = vadd.f32 %v162, %v100
    %v164 = vadd.f32 %v163, %v101
    %v165 = vadd.f32 %v164, %v102
    %v166 = vadd.f32 %v165, %v103
    %v167 = vadd.f32 %v166, %v104
    %v168 = vadd.f32 %v167, %v105
    %v169 = vadd.f32 %v168, %v106
    %v170 = vadd.f32 %v169, %v107
    %v171 = vadd.f32 %v170, %v108
    %v172 = vadd.f32 %v171, %v109
    %v173 = vadd.f32 %v172, %v110
    %v174 = vld [vmem:[#allocation5] sm:$0xff]
    %v175 = vadd.f32 %v174, %v173
    %176 = vst [vmem:[#allocation5] sm:$0xff] %v175
    %v177 = vld [vmem:[#allocation6] sm:$0xff]
    %v178 = vld [vmem:[#allocation6 + $0x8] sm:$0xff]
    %v179 = vld [vmem:[#allocation6 + $0x10] sm:$0xff]
    %v180 = vld [vmem:[#allocation6 + $0x18] sm:$0xff]
    %v181 = vld [vmem:[#allocation6 + $0x20] sm:$0xff]
    %v182 = vld [vmem:[#allocation6 + $0x28] sm:$0xff]
    %v183 = vld [vmem:[#allocation6 + $0x30] sm:$0xff]
    %v184 = vld [vmem:[#allocation6 + $0x38] sm:$0xff]
    %v185 = vld [vmem:[#allocation6 + $0x40] sm:$0xff]
    %v186 = vld [vmem:[#allocation6 + $0x48] sm:$0xff]
    %v187 = vld [vmem:[#allocation6 + $0x50] sm:$0xff]
    %v188 = vld [vmem:[#allocation6 + $0x58] sm:$0xff]
    %v189 = vld [vmem:[#allocation6 + $0x60] sm:$0xff]
    %v190 = vld [vmem:[#allocation6 + $0x68] sm:$0xff]
    %v191 = vld [vmem:[#allocation6 + $0x70] sm:$0xff]
    %v192 = vld [vmem:[#allocation6 + $0x78] sm:$0xff]
    %193 = vxpose.xlu0.b32.start [1/16] %v47, 128
    %194 = vxpose.xlu0.b32.cont [2/16] %v48, 128
    %195 = vxpose.xlu0.b32.cont [3/16] %v49, 128
    %196 = vxpose.xlu0.b32.cont [4/16] %v50, 128
    %197 = vxpose.xlu0.b32.cont [5/16] %v51, 128
    %198 = vxpose.xlu0.b32.cont [6/16] %v52, 128
    %199 = vxpose.xlu0.b32.cont [7/16] %v53, 128
    %200 = vxpose.xlu0.b32.cont [8/16] %v54, 128
    %201 = vxpose.xlu0.b32.cont [9/16] %v55, 128
    %202 = vxpose.xlu0.b32.cont [10/16] %v56, 128
    %203 = vxpose.xlu0.b32.cont [11/16] %v57, 128
    %204 = vxpose.xlu0.b32.cont [12/16] %v58, 128
    %205 = vxpose.xlu0.b32.cont [13/16] %v59, 128
    %206 = vxpose.xlu0.b32.cont [14/16] %v60, 128
    %207 = vxpose.xlu0.b32.cont [15/16] %v61, 128
    %208 = vxpose.xlu0.b32.end [16/16] %v62, 128
    %v209 = vpop.trf.xlu0
    %v210 = vpop.trf.xlu0
    %v211 = vpop.trf.xlu0
    %v212 = vpop.trf.xlu0
    %v213 = vpop.trf.xlu0
    %v214 = vpop.trf.xlu0
    %v215 = vpop.trf.xlu0
    %v216 = vpop.trf.xlu0
    %v217 = vpop.trf.xlu0
    %v218 = vpop.trf.xlu0
    %v219 = vpop.trf.xlu0
    %v220 = vpop.trf.xlu0
    %v221 = vpop.trf.xlu0
    %v222 = vpop.trf.xlu0
    %v223 = vpop.trf.xlu0
    %v224 = vpop.trf.xlu0
    %225 = vxpose.xlu0.b32.start [1/16] %v63, 128
    %226 = vxpose.xlu0.b32.cont [2/16] %v64, 128
    %227 = vxpose.xlu0.b32.cont [3/16] %v65, 128
    %228 = vxpose.xlu0.b32.cont [4/16] %v66, 128
    %229 = vxpose.xlu0.b32.cont [5/16] %v67, 128
    %230 = vxpose.xlu0.b32.cont [6/16] %v68, 128
    %231 = vxpose.xlu0.b32.cont [7/16] %v69, 128
    %232 = vxpose.xlu0.b32.cont [8/16] %v70, 128
    %233 = vxpose.xlu0.b32.cont [9/16] %v71, 128
    %234 = vxpose.xlu0.b32.cont [10/16] %v72, 128
    %235 = vxpose.xlu0.b32.cont [11/16] %v73, 128
    %236 = vxpose.xlu0.b32.cont [12/16] %v74, 128
    %237 = vxpose.xlu0.b32.cont [13/16] %v75, 128
    %238 = vxpose.xlu0.b32.cont [14/16] %v76, 128
    %239 = vxpose.xlu0.b32.cont [15/16] %v77, 128
    %240 = vxpose.xlu0.b32.end [16/16] %v78, 128
    %v241 = vpop.trf.xlu0
    %v242 = vpop.trf.xlu0
    %v243 = vpop.trf.xlu0
    %v244 = vpop.trf.xlu0
    %v245 = vpop.trf.xlu0
    %v246 = vpop.trf.xlu0
    %v247 = vpop.trf.xlu0
    %v248 = vpop.trf.xlu0
    %v249 = vpop.trf.xlu0
    %v250 = vpop.trf.xlu0
    %v251 = vpop.trf.xlu0
    %v252 = vpop.trf.xlu0
    %v253 = vpop.trf.xlu0
    %v254 = vpop.trf.xlu0
    %v255 = vpop.trf.xlu0
    %v256 = vpop.trf.xlu0
    %257 = vxpose.xlu0.b32.start [1/16] %v79, 128
    %258 = vxpose.xlu0.b32.cont [2/16] %v80, 128
    %259 = vxpose.xlu0.b32.cont [3/16] %v81, 128
    %260 = vxpose.xlu0.b32.cont [4/16] %v82, 128
    %261 = vxpose.xlu0.b32.cont [5/16] %v83, 128
    %262 = vxpose.xlu0.b32.cont [6/16] %v84, 128
    %263 = vxpose.xlu0.b32.cont [7/16] %v85, 128
    %264 = vxpose.xlu0.b32.cont [8/16] %v86, 128
    %265 = vxpose.xlu0.b32.cont [9/16] %v87, 128
    %266 = vxpose.xlu0.b32.cont [10/16] %v88, 128
    %267 = vxpose.xlu0.b32.cont [11/16] %v89, 128
    %268 = vxpose.xlu0.b32.cont [12/16] %v90, 128
    %269 = vxpose.xlu0.b32.cont [13/16] %v91, 128
    %270 = vxpose.xlu0.b32.cont [14/16] %v92, 128
    %271 = vxpose.xlu0.b32.cont [15/16] %v93, 128
    %272 = vxpose.xlu0.b32.end [16/16] %v94, 128
    %v273 = vpop.trf.xlu0
    %v274 = vpop.trf.xlu0
    %v275 = vpop.trf.xlu0
    %v276 = vpop.trf.xlu0
    %v277 = vpop.trf.xlu0
    %v278 = vpop.trf.xlu0
    %v279 = vpop.trf.xlu0
    %v280 = vpop.trf.xlu0
    %v281 = vpop.trf.xlu0
    %v282 = vpop.trf.xlu0
    %v283 = vpop.trf.xlu0
    %v284 = vpop.trf.xlu0
    %v285 = vpop.trf.xlu0
    %v286 = vpop.trf.xlu0
    %v287 = vpop.trf.xlu0
    %v288 = vpop.trf.xlu0
    %289 = vxpose.xlu0.b32.start [1/16] %v95, 128
    %290 = vxpose.xlu0.b32.cont [2/16] %v96, 128
    %291 = vxpose.xlu0.b32.cont [3/16] %v97, 128
    %292 = vxpose.xlu0.b32.cont [4/16] %v98, 128
    %293 = vxpose.xlu0.b32.cont [5/16] %v99, 128
    %294 = vxpose.xlu0.b32.cont [6/16] %v100, 128
    %295 = vxpose.xlu0.b32.cont [7/16] %v101, 128
    %296 = vxpose.xlu0.b32.cont [8/16] %v102, 128
    %297 = vxpose.xlu0.b32.cont [9/16] %v103, 128
    %298 = vxpose.xlu0.b32.cont [10/16] %v104, 128
    %299 = vxpose.xlu0.b32.cont [11/16] %v105, 128
    %300 = vxpose.xlu0.b32.cont [12/16] %v106, 128
    %301 = vxpose.xlu0.b32.cont [13/16] %v107, 128
    %302 = vxpose.xlu0.b32.cont [14/16] %v108, 128
    %303 = vxpose.xlu0.b32.cont [15/16] %v109, 128
    %304 = vxpose.xlu0.b32.end [16/16] %v110, 128
    %v305 = vpop.trf.xlu0
    %v306 = vpop.trf.xlu0
    %v307 = vpop.trf.xlu0
    %v308 = vpop.trf.xlu0
    %v309 = vpop.trf.xlu0
    %v310 = vpop.trf.xlu0
    %v311 = vpop.trf.xlu0
    %v312 = vpop.trf.xlu0
    %v313 = vpop.trf.xlu0
    %v314 = vpop.trf.xlu0
    %v315 = vpop.trf.xlu0
    %v316 = vpop.trf.xlu0
    %v317 = vpop.trf.xlu0
    %v318 = vpop.trf.xlu0
    %v319 = vpop.trf.xlu0
    %v320 = vpop.trf.xlu0
    %321 = vmatprep.subr.mxu0 0.0
    %322 = vmatpush1.msra.mxu0 %v62
    %323 = vmatprep.subr.mxu0 0.0
    %324 = vmatpush1.msra.mxu0 %v61
    %325 = vmatprep.subr.mxu0 0.0
    %326 = vmatpush1.msra.mxu0 %v60
    %327 = vmatprep.subr.mxu0 0.0
    %328 = vmatpush1.msra.mxu0 %v59
    %329 = vmatprep.subr.mxu0 0.0
    %330 = vmatpush1.msra.mxu0 %v58
    %331 = vmatprep.subr.mxu0 0.0
    %332 = vmatpush1.msra.mxu0 %v57
    %333 = vmatprep.subr.mxu0 0.0
    %334 = vmatpush1.msra.mxu0 %v56
    %335 = vmatprep.subr.mxu0 0.0
    %336 = vmatpush1.msra.mxu0 %v55
    %337 = vmatprep.subr.mxu0 0.0
    %338 = vmatpush1.msra.mxu0 %v54
    %339 = vmatprep.subr.mxu0 0.0
    %340 = vmatpush1.msra.mxu0 %v53
    %341 = vmatprep.subr.mxu0 0.0
    %342 = vmatpush1.msra.mxu0 %v52
    %343 = vmatprep.subr.mxu0 0.0
    %344 = vmatpush1.msra.mxu0 %v51
    %345 = vmatprep.subr.mxu0 0.0
    %346 = vmatpush1.msra.mxu0 %v50
    %347 = vmatprep.subr.mxu0 0.0
    %348 = vmatpush1.msra.mxu0 %v49
    %349 = vmatprep.subr.mxu0 0.0
    %350 = vmatpush1.msra.mxu0 %v48
    %351 = vmatprep.subr.mxu0 0.0
    %352 = vmatpush1.msra.mxu0 %v47
    %353 = vmatprep.subr.mxu0 0.0
    %354 = vmatpush2.msra.mxu0 %v78
    %355 = vmatprep.subr.mxu0 0.0
    %356 = vmatpush2.msra.mxu0 %v77
    %357 = vmatprep.subr.mxu0 0.0
    %358 = vmatpush2.msra.mxu0 %v76
    %359 = vmatprep.subr.mxu0 0.0
    %360 = vmatpush2.msra.mxu0 %v75
    %361 = vmatprep.subr.mxu0 0.0
    %362 = vmatpush2.msra.mxu0 %v74
    %363 = vmatprep.subr.mxu0 0.0
    %364 = vmatpush2.msra.mxu0 %v73
    %365 = vmatprep.subr.mxu0 0.0
    %366 = vmatpush2.msra.mxu0 %v72
    %367 = vmatprep.subr.mxu0 0.0
    %368 = vmatpush2.msra.mxu0 %v71
    %369 = vmatprep.subr.mxu0 0.0
    %370 = vmatpush2.msra.mxu0 %v70
    %371 = vmatprep.subr.mxu0 0.0
    %372 = vmatpush2.msra.mxu0 %v69
    %373 = vmatprep.subr.mxu0 0.0
    %374 = vmatpush2.msra.mxu0 %v68
    %375 = vmatprep.subr.mxu0 0.0
    %376 = vmatpush2.msra.mxu0 %v67
    %377 = vmatprep.subr.mxu0 0.0
    %378 = vmatpush2.msra.mxu0 %v66
    %379 = vmatprep.subr.mxu0 0.0
    %380 = vmatpush2.msra.mxu0 %v65
    %381 = vmatprep.subr.mxu0 0.0
    %382 = vmatpush2.msra.mxu0 %v64
    %383 = vmatprep.subr.mxu0 0.0
    %384 = vmatpush2.msra.mxu0 %v63
    %385 = vmatprep.mubr.f32.mxu0 %v241
    %386 = vmatmul.mubr.f32.gmra.mxu0 %v209
    %v387 = vpop.f32.mrf.mxu0
    %v388 = vadd.f32 0.0, %v387
    %v389 = vpop.f32.mrf.mxu0
    %390 = vmatprep.mubr.f32.mxu0 %v242
    %391 = vmatmul.mubr.f32.gmra.mxu0 %v210
    %v392 = vpop.f32.mrf.mxu0
    %v393 = vadd.f32 0.0, %v392
    %v394 = vpop.f32.mrf.mxu0
    %395 = vmatprep.mubr.f32.mxu0 %v243
    %396 = vmatmul.mubr.f32.gmra.mxu0 %v211
    %v397 = vpop.f32.mrf.mxu0
    %v398 = vadd.f32 0.0, %v397
    %v399 = vpop.f32.mrf.mxu0
    %400 = vmatprep.mubr.f32.mxu0 %v244
    %401 = vmatmul.mubr.f32.gmra.mxu0 %v212
    %v402 = vpop.f32.mrf.mxu0
    %v403 = vadd.f32 0.0, %v402
    %v404 = vpop.f32.mrf.mxu0
    %405 = vmatprep.mubr.f32.mxu0 %v245
    %406 = vmatmul.mubr.f32.gmra.mxu0 %v213
    %v407 = vpop.f32.mrf.mxu0
    %v408 = vadd.f32 0.0, %v407
    %v409 = vpop.f32.mrf.mxu0
    %410 = vmatprep.mubr.f32.mxu0 %v246
    %411 = vmatmul.mubr.f32.gmra.mxu0 %v214
    %v412 = vpop.f32.mrf.mxu0
    %v413 = vadd.f32 0.0, %v412
    %v414 = vpop.f32.mrf.mxu0
    %415 = vmatprep.mubr.f32.mxu0 %v247
    %416 = vmatmul.mubr.f32.gmra.mxu0 %v215
    %v417 = vpop.f32.mrf.mxu0
    %v418 = vadd.f32 0.0, %v417
    %v419 = vpop.f32.mrf.mxu0
    %420 = vmatprep.mubr.f32.mxu0 %v248
    %421 = vmatmul.mubr.f32.gmra.mxu0 %v216
    %v422 = vpop.f32.mrf.mxu0
    %v423 = vadd.f32 0.0, %v422
    %v424 = vpop.f32.mrf.mxu0
    %425 = vmatprep.mubr.f32.mxu0 %v249
    %426 = vmatmul.mubr.f32.gmra.mxu0 %v217
    %v427 = vpop.f32.mrf.mxu0
    %v428 = vadd.f32 0.0, %v427
    %v429 = vpop.f32.mrf.mxu0
    %430 = vmatprep.mubr.f32.mxu0 %v250
    %431 = vmatmul.mubr.f32.gmra.mxu0 %v218
    %v432 = vpop.f32.mrf.mxu0
    %v433 = vadd.f32 0.0, %v432
    %v434 = vpop.f32.mrf.mxu0
    %435 = vmatprep.mubr.f32.mxu0 %v251
    %436 = vmatmul.mubr.f32.gmra.mxu0 %v219
    %v437 = vpop.f32.mrf.mxu0
    %v438 = vadd.f32 0.0, %v437
    %v439 = vpop.f32.mrf.mxu0
    %440 = vmatprep.mubr.f32.mxu0 %v252
    %441 = vmatmul.mubr.f32.gmra.mxu0 %v220
    %v442 = vpop.f32.mrf.mxu0
    %v443 = vadd.f32 0.0, %v442
    %v444 = vpop.f32.mrf.mxu0
    %445 = vmatprep.mubr.f32.mxu0 %v253
    %446 = vmatmul.mubr.f32.gmra.mxu0 %v221
    %v447 = vpop.f32.mrf.mxu0
    %v448 = vadd.f32 0.0, %v447
    %v449 = vpop.f32.mrf.mxu0
    %450 = vmatprep.mubr.f32.mxu0 %v254
    %451 = vmatmul.mubr.f32.gmra.mxu0 %v222
    %v452 = vpop.f32.mrf.mxu0
    %v453 = vadd.f32 0.0, %v452
    %v454 = vpop.f32.mrf.mxu0
    %455 = vmatprep.mubr.f32.mxu0 %v255
    %456 = vmatmul.mubr.f32.gmra.mxu0 %v223
    %v457 = vpop.f32.mrf.mxu0
    %v458 = vadd.f32 0.0, %v457
    %v459 = vpop.f32.mrf.mxu0
    %460 = vmatprep.mubr.f32.mxu0 %v256
    %461 = vmatmul.mubr.f32.gmra.mxu0 %v224
    %v462 = vpop.f32.mrf.mxu0
    %v463 = vadd.f32 0.0, %v462
    %v464 = vpop.f32.mrf.mxu0
    %465 = vdwg.mxu0
    %466 = vmatprep.subr.mxu0 0.0
    %467 = vmatpush1.msra.mxu0 %v94
    %468 = vmatprep.subr.mxu0 0.0
    %469 = vmatpush1.msra.mxu0 %v93
    %470 = vmatprep.subr.mxu0 0.0
    %471 = vmatpush1.msra.mxu0 %v92
    %472 = vmatprep.subr.mxu0 0.0
    %473 = vmatpush1.msra.mxu0 %v91
    %474 = vmatprep.subr.mxu0 0.0
    %475 = vmatpush1.msra.mxu0 %v90
    %476 = vmatprep.subr.mxu0 0.0
    %477 = vmatpush1.msra.mxu0 %v89
    %478 = vmatprep.subr.mxu0 0.0
    %479 = vmatpush1.msra.mxu0 %v88
    %480 = vmatprep.subr.mxu0 0.0
    %481 = vmatpush1.msra.mxu0 %v87
    %482 = vmatprep.subr.mxu0 0.0
    %483 = vmatpush1.msra.mxu0 %v86
    %484 = vmatprep.subr.mxu0 0.0
    %485 = vmatpush1.msra.mxu0 %v85
    %486 = vmatprep.subr.mxu0 0.0
    %487 = vmatpush1.msra.mxu0 %v84
    %488 = vmatprep.subr.mxu0 0.0
    %489 = vmatpush1.msra.mxu0 %v83
    %490 = vmatprep.subr.mxu0 0.0
    %491 = vmatpush1.msra.mxu0 %v82
    %492 = vmatprep.subr.mxu0 0.0
    %493 = vmatpush1.msra.mxu0 %v81
    %494 = vmatprep.subr.mxu0 0.0
    %495 = vmatpush1.msra.mxu0 %v80
    %496 = vmatprep.subr.mxu0 0.0
    %497 = vmatpush1.msra.mxu0 %v79
    %498 = vmatprep.subr.mxu0 0.0
    %499 = vmatpush2.msra.mxu0 %v110
    %500 = vmatprep.subr.mxu0 0.0
    %501 = vmatpush2.msra.mxu0 %v109
    %502 = vmatprep.subr.mxu0 0.0
    %503 = vmatpush2.msra.mxu0 %v108
    %504 = vmatprep.subr.mxu0 0.0
    %505 = vmatpush2.msra.mxu0 %v107
    %506 = vmatprep.subr.mxu0 0.0
    %507 = vmatpush2.msra.mxu0 %v106
    %508 = vmatprep.subr.mxu0 0.0
    %509 = vmatpush2.msra.mxu0 %v105
    %510 = vmatprep.subr.mxu0 0.0
    %511 = vmatpush2.msra.mxu0 %v104
    %512 = vmatprep.subr.mxu0 0.0
    %513 = vmatpush2.msra.mxu0 %v103
    %514 = vmatprep.subr.mxu0 0.0
    %515 = vmatpush2.msra.mxu0 %v102
    %516 = vmatprep.subr.mxu0 0.0
    %517 = vmatpush2.msra.mxu0 %v101
    %518 = vmatprep.subr.mxu0 0.0
    %519 = vmatpush2.msra.mxu0 %v100
    %520 = vmatprep.subr.mxu0 0.0
    %521 = vmatpush2.msra.mxu0 %v99
    %522 = vmatprep.subr.mxu0 0.0
    %523 = vmatpush2.msra.mxu0 %v98
    %524 = vmatprep.subr.mxu0 0.0
    %525 = vmatpush2.msra.mxu0 %v97
    %526 = vmatprep.subr.mxu0 0.0
    %527 = vmatpush2.msra.mxu0 %v96
    %528 = vmatprep.subr.mxu0 0.0
    %529 = vmatpush2.msra.mxu0 %v95
    %530 = vmatprep.mubr.f32.mxu0 %v305
    %531 = vmatmul.mubr.f32.gmra.mxu0 %v273
    %v532 = vpop.f32.mrf.mxu0
    %v533 = vadd.f32 %v388, %v532
    %v534 = vpop.f32.mrf.mxu0
    %535 = vmatprep.mubr.f32.mxu0 %v306
    %536 = vmatmul.mubr.f32.gmra.mxu0 %v274
    %v537 = vpop.f32.mrf.mxu0
    %v538 = vadd.f32 %v393, %v537
    %v539 = vpop.f32.mrf.mxu0
    %540 = vmatprep.mubr.f32.mxu0 %v307
    %541 = vmatmul.mubr.f32.gmra.mxu0 %v275
    %v542 = vpop.f32.mrf.mxu0
    %v543 = vadd.f32 %v398, %v542
    %v544 = vpop.f32.mrf.mxu0
    %545 = vmatprep.mubr.f32.mxu0 %v308
    %546 = vmatmul.mubr.f32.gmra.mxu0 %v276
    %v547 = vpop.f32.mrf.mxu0
    %v548 = vadd.f32 %v403, %v547
    %v549 = vpop.f32.mrf.mxu0
    %550 = vmatprep.mubr.f32.mxu0 %v309
    %551 = vmatmul.mubr.f32.gmra.mxu0 %v277
    %v552 = vpop.f32.mrf.mxu0
    %v553 = vadd.f32 %v408, %v552
    %v554 = vpop.f32.mrf.mxu0
    %555 = vmatprep.mubr.f32.mxu0 %v310
    %556 = vmatmul.mubr.f32.gmra.mxu0 %v278
    %v557 = vpop.f32.mrf.mxu0
    %v558 = vadd.f32 %v413, %v557
    %v559 = vpop.f32.mrf.mxu0
    %560 = vmatprep.mubr.f32.mxu0 %v311
    %561 = vmatmul.mubr.f32.gmra.mxu0 %v279
    %v562 = vpop.f32.mrf.mxu0
    %v563 = vadd.f32 %v418, %v562
    %v564 = vpop.f32.mrf.mxu0
    %565 = vmatprep.mubr.f32.mxu0 %v312
    %566 = vmatmul.mubr.f32.gmra.mxu0 %v280
    %v567 = vpop.f32.mrf.mxu0
    %v568 = vadd.f32 %v423, %v567
    %v569 = vpop.f32.mrf.mxu0
    %570 = vmatprep.mubr.f32.mxu0 %v313
    %571 = vmatmul.mubr.f32.gmra.mxu0 %v281
    %v572 = vpop.f32.mrf.mxu0
    %v573 = vadd.f32 %v428, %v572
    %v574 = vpop.f32.mrf.mxu0
    %575 = vmatprep.mubr.f32.mxu0 %v314
    %576 = vmatmul.mubr.f32.gmra.mxu0 %v282
    %v577 = vpop.f32.mrf.mxu0
    %v578 = vadd.f32 %v433, %v577
    %v579 = vpop.f32.mrf.mxu0
    %580 = vmatprep.mubr.f32.mxu0 %v315
    %581 = vmatmul.mubr.f32.gmra.mxu0 %v283
    %v582 = vpop.f32.mrf.mxu0
    %v583 = vadd.f32 %v438, %v582
    %v584 = vpop.f32.mrf.mxu0
    %585 = vmatprep.mubr.f32.mxu0 %v316
    %586 = vmatmul.mubr.f32.gmra.mxu0 %v284
    %v587 = vpop.f32.mrf.mxu0
    %v588 = vadd.f32 %v443, %v587
    %v589 = vpop.f32.mrf.mxu0
    %590 = vmatprep.mubr.f32.mxu0 %v317
    %591 = vmatmul.mubr.f32.gmra.mxu0 %v285
    %v592 = vpop.f32.mrf.mxu0
    %v593 = vadd.f32 %v448, %v592
    %v594 = vpop.f32.mrf.mxu0
    %595 = vmatprep.mubr.f32.mxu0 %v318
    %596 = vmatmul.mubr.f32.gmra.mxu0 %v286
    %v597 = vpop.f32.mrf.mxu0
    %v598 = vadd.f32 %v453, %v597
    %v599 = vpop.f32.mrf.mxu0
    %600 = vmatprep.mubr.f32.mxu0 %v319
    %601 = vmatmul.mubr.f32.gmra.mxu0 %v287
    %v602 = vpop.f32.mrf.mxu0
    %v603 = vadd.f32 %v458, %v602
    %v604 = vpop.f32.mrf.mxu0
    %605 = vmatprep.mubr.f32.mxu0 %v320
    %606 = vmatmul.mubr.f32.gmra.mxu0 %v288
    %v607 = vpop.f32.mrf.mxu0
    %v608 = vadd.f32 %v463, %v607
    %v609 = vpop.f32.mrf.mxu0
    %610 = vdwg.mxu0
    %v611 = vadd.f32 %v177, %v533
    %v612 = vadd.f32 %v178, %v538
    %v613 = vadd.f32 %v179, %v543
    %v614 = vadd.f32 %v180, %v548
    %v615 = vadd.f32 %v181, %v553
    %v616 = vadd.f32 %v182, %v558
    %v617 = vadd.f32 %v183, %v563
    %v618 = vadd.f32 %v184, %v568
    %v619 = vadd.f32 %v185, %v573
    %v620 = vadd.f32 %v186, %v578
    %v621 = vadd.f32 %v187, %v583
    %v622 = vadd.f32 %v188, %v588
    %v623 = vadd.f32 %v189, %v593
    %v624 = vadd.f32 %v190, %v598
    %v625 = vadd.f32 %v191, %v603
    %v626 = vadd.f32 %v192, %v608
    %627 = vst [vmem:[#allocation6] sm:$0xff] %v611
    %628 = vst [vmem:[#allocation6 + $0x8] sm:$0xff] %v612
    %629 = vst [vmem:[#allocation6 + $0x10] sm:$0xff] %v613
    %630 = vst [vmem:[#allocation6 + $0x18] sm:$0xff] %v614
    %631 = vst [vmem:[#allocation6 + $0x20] sm:$0xff] %v615
    %632 = vst [vmem:[#allocation6 + $0x28] sm:$0xff] %v616
    %633 = vst [vmem:[#allocation6 + $0x30] sm:$0xff] %v617
    %634 = vst [vmem:[#allocation6 + $0x38] sm:$0xff] %v618
    %635 = vst [vmem:[#allocation6 + $0x40] sm:$0xff] %v619
    %636 = vst [vmem:[#allocation6 + $0x48] sm:$0xff] %v620
    %637 = vst [vmem:[#allocation6 + $0x50] sm:$0xff] %v621
    %638 = vst [vmem:[#allocation6 + $0x58] sm:$0xff] %v622
    %639 = vst [vmem:[#allocation6 + $0x60] sm:$0xff] %v623
    %640 = vst [vmem:[#allocation6 + $0x68] sm:$0xff] %v624
    %641 = vst [vmem:[#allocation6 + $0x70] sm:$0xff] %v625
    %642 = vst [vmem:[#allocation6 + $0x78] sm:$0xff] %v626
    // Predicated region
    $region14: #{tpu_custom_call.1} parent=1 // pred_check
      _
    $region15: #{tpu_custom_call.1} parent=1 // pred_check_branch
      %644 = sbr.rel (0) target = $region17
    $region16: #{tpu_custom_call.1} parent=1 // pred_region
      %s646 = ssub.s32 128, 128
      %647 = vsyncadd [#allocation4], %s646
      %s649 = sshll.u32 [#allocation5], 4
      %s650 = int_to_ptr.vmem [resolvable:$true] %s649
      %652 = dma.vmem_to_hbm [thread:$0]  %s650, 128, %s1, [#allocation4]
    $region17: #{tpu_custom_call.1} parent=1 // pred_fallthru
      _
    // Predicated region
    $region18: #{tpu_custom_call.1} parent=1 // pred_check
      _
    $region19: #{tpu_custom_call.1} parent=1 // pred_check_branch
      %654 = sbr.rel (0) target = $region21
    $region20: #{tpu_custom_call.1} parent=1 // pred_region
      %s656 = ssub.s32 2048, 2048
      %657 = vsyncadd [#allocation7], %s656
      %s658 = sshll.u32 [#allocation6], 4
      %s659 = int_to_ptr.vmem [resolvable:$true] %s658
      %664 = dma.vmem_to_hbm [thread:$0]  %s659, 2048, %s2, [#allocation7], 128, 128, 8
    $region21: #{tpu_custom_call.1} parent=1 // pred_fallthru
      _
    // Predicated region
    $region22: #{tpu_custom_call.1} parent=1 // pred_check
      _
    $region23: #{tpu_custom_call.1} parent=1 // pred_check_branch
      %666 = sbr.rel (0) target = $region25
    $region24: #{tpu_custom_call.1} parent=1 // pred_region
      %667 = dma.done [#allocation4], 128
    $region25: #{tpu_custom_call.1} parent=1 // pred_fallthru
      _
    // Predicated region
    $region26: #{tpu_custom_call.1} parent=1 // pred_check
      _
    $region27: #{tpu_custom_call.1} parent=1 // pred_check_branch
      %669 = sbr.rel (0) target = $region29
    $region28: #{tpu_custom_call.1} parent=1 // pred_region
      %670 = dma.done [#allocation7], 2048
    $region29: #{tpu_custom_call.1} parent=1 // pred_fallthru
      _
    %671 = vsyncpa [#allocation3], 1
    %672 = vsyncpa [#allocation4], 1
    %673 = vsyncpa [#allocation7], 1

</llo_original>
